<compile_context>
chip_gen: v7x
topology: tpu7x:2x2x1
jax: 0.10.0
libtpu: 0.0.40
codegen_flags: <defaults>
</compile_context>

<pallas_src>
import functools

import jax
import jax.numpy as jnp
from jax.experimental import pallas as pl
from jax.experimental.pallas import tpu as pltpu

_MiB = 1024 * 1024
# Keep the whole VMEM footprint comfortably under v7x's 64 MiB physical VMEM
# (v5e / v6e have 128 MiB, so this bound is safe everywhere).
_MAX_VMEM_BYTES = 56 * _MiB
# Below this many input bytes the whole op is ~one grid step and Pallas
# dispatch/pipeline setup dominates; XLA's fused mean+matmul is as fast.
_SMALL_PROBLEM_BYTES = 4 * _MiB


def _silu(x):
    # f32-safe SiLU; exp(-x) overflow saturates the sigmoid to 0 (no NaN).
    return x * (1.0 / (1.0 + jnp.exp(-x)))


def boxhead_kernel(x_ref, w1_ref, b1_ref, w2_ref, b2_ref, o_ref, acc_ref, *, inv_hw):
    k = pl.program_id(1)

    @pl.when(k == 0)
    def _init():
        acc_ref[...] = jnp.zeros_like(acc_ref)

    # Partial spatial sum for this tile: (n_tile, C, hw_tile) -> (n_tile, C).
    x = x_ref[...].astype(jnp.float32)
    acc_ref[...] += jnp.sum(x, axis=-1)

    @pl.when(k == pl.num_programs(1) - 1)
    def _finalize():
        pooled = acc_ref[...] * inv_hw                                # mean over (H, W)
        h = _silu(jnp.dot(pooled, w1_ref[...],
                          preferred_element_type=jnp.float32) + b1_ref[...])
        y = _silu(jnp.dot(h, w2_ref[...],
                          preferred_element_type=jnp.float32) + b2_ref[...])
        o_ref[...] = y.astype(o_ref.dtype)


def _divisor_candidates(total, step):
    """Divisors of `total` that are multiples of `step`, plus `total` (descending)."""
    cands = {total}
    for d in range(step, total, step):
        if total % d == 0:
            cands.add(d)
    return sorted(cands, reverse=True)


def _x_buffer_target_bytes():
    """Per-generation per-buffer target for the streamed x block (amortizes the
    ~0.35 us/step pipeline overhead against each chip's HBM bandwidth)."""
    try:
        kind = jax.devices()[0].device_kind.lower()
    except Exception:
        kind = ""
    if "v5 lite" in kind or "v5e" in kind or "v5litepod" in kind:
        return 6 * _MiB        # v5e: ~820 GB/s; scoped-VMEM default is only 16 MiB
    if "v6" in kind:
        return 16 * _MiB       # v6e: ~1.4 TB/s; 128 MiB physical VMEM
    if "v7" in kind:
        return 12 * _MiB       # v7x: ~3.2 TB/s; only 64 MiB physical VMEM
    return 8 * _MiB            # conservative default for unknown generations


def _pick_tiles(N, C, HW, itemsize, x_target_bytes, min_batch_tiles=2):
    """Jointly pick (n_tile, hw_tile) under the per-buffer byte target.

    n_tile: multiple-of-8 divisor of N (or N itself) -> satisfies the output
            block sublane rule.  hw_tile: multiple-of-128 divisor of HW (or HW)
            -> satisfies the lane rule.
    """
    n_cands = _divisor_candidates(N, 8)
    hw_cands = _divisor_candidates(HW, 128)

    # Prefer >= min_batch_tiles steps on the parallel batch axis so both v7x
    # TensorCores get work; harmless on single-TC chips (same total steps).
    pref = [c for c in n_cands if N // c >= min_batch_tiles]
    ordered_n = pref if pref else n_cands

    best_key, best = None, None
    for n_t in ordered_n:
        fit = [h for h in hw_cands if n_t * C * h * itemsize <= x_target_bytes]
        hw_t = fit[0] if fit else hw_cands[-1]      # largest fitting, else smallest legal
        blk = n_t * C * hw_t * itemsize
        over = max(0, blk - x_target_bytes)
        steps = (N // n_t) * (HW // hw_t)
        key = (over, steps, -blk)                   # fit budget, then fewest steps
        if best_key is None or key < best_key:
            best_key, best = key, (n_t, hw_t)
    return best


def _build_call(N, C, HW, n_tile, hw_tile, out_dtype, vmem_limit, single_buffer_weights):
    kernel = functools.partial(boxhead_kernel, inv_hw=1.0 / float(HW))
    resident_kwargs = (
        dict(pipeline_mode=pl.Buffered(1)) if single_buffer_weights else {}
    )
    grid = (N // n_tile, HW // hw_tile)
    grid_spec = pltpu.PrefetchScalarGridSpec(
        num_scalar_prefetch=0,
        grid=grid,
        in_specs=[
            pl.BlockSpec((n_tile, C, hw_tile), lambda i, k: (i, 0, k)),
            pl.BlockSpec((C, C), lambda i, k: (0, 0), **resident_kwargs),  # w1^T
            pl.BlockSpec((1, C), lambda i, k: (0, 0), **resident_kwargs),  # b1
            pl.BlockSpec((C, C), lambda i, k: (0, 0), **resident_kwargs),  # w2^T
            pl.BlockSpec((1, C), lambda i, k: (0, 0), **resident_kwargs),  # b2
        ],
        out_specs=pl.BlockSpec((n_tile, C), lambda i, k: (i, 0)),
        scratch_shapes=[pltpu.VMEM((n_tile, C), jnp.float32)],
    )
    return pl.pallas_call(
        kernel,
        out_shape=jax.ShapeDtypeStruct((N, C), out_dtype),
        grid_spec=grid_spec,
        compiler_params=pltpu.CompilerParams(
            dimension_semantics=("parallel", "arbitrary"),
            vmem_limit_bytes=int(vmem_limit),
        ),
    )


def box_head_ref(x_nchw, w1, b1, w2, b2):
    pooled = jnp.mean(x_nchw.astype(jnp.float32), axis=(2, 3))
    h = jax.nn.silu(pooled @ w1.T.astype(jnp.float32) + b1.astype(jnp.float32))
    y = jax.nn.silu(h @ w2.T.astype(jnp.float32) + b2.astype(jnp.float32))
    return y.astype(x_nchw.dtype)


def box_head(x_nchw, w1, b1, w2, b2, *, use_pallas=None):
    """x_nchw: (N, C, H, W); w1, w2: PyTorch Linear (out, in) weights; b1, b2: (C,)."""
    N, C, H, W = x_nchw.shape
    HW = H * W
    itemsize = jnp.dtype(x_nchw.dtype).itemsize
    total_x_bytes = N * C * HW * itemsize

    if use_pallas is None:
        # Small-problem fallback: Pallas dispatch overhead dominates here.
        use_pallas = total_x_bytes >= _SMALL_PROBLEM_BYTES

    # Padded-footprint estimates for the resident operands ((8,128) tiling).
    c_lane = ((C + 127) // 128) * 128
    c_sub = ((C + 7) // 8) * 8
    w_itemsize = jnp.dtype(w1.dtype).itemsize
    w_bytes = 2 * c_sub * c_lane * w_itemsize        # w1 + w2 (padded)
    bias_bytes = 2 * 8 * c_lane * 4

    # Per-x-buffer target, clamped so 2 x-buffers + resident data stay in budget.
    x_target = _x_buffer_target_bytes()
    x_target = min(
        x_target,
        max((_MAX_VMEM_BYTES - 2 * w_bytes - bias_bytes - 2 * _MiB) // 2, _MiB),
    )

    n_tile = hw_tile = footprint = None
    if use_pallas:
        n_tile, hw_tile = _pick_tiles(N, C, HW, itemsize, x_target)
        n_sub = ((n_tile + 7) // 8) * 8
        x_block_bytes = n_tile * C * hw_tile * itemsize
        out_acc_bytes = 2 * n_sub * c_lane * itemsize + n_sub * c_lane * 4
        footprint = 2 * x_block_bytes + 2 * w_bytes + bias_bytes + out_acc_bytes
        if footprint > _MAX_VMEM_BYTES:
            # Even the smallest legal blocks don't fit (e.g. huge N with N % 8 != 0
            # or very large C): fall back to the XLA path rather than fail compile.
            use_pallas = False

    if not use_pallas:
        return box_head_ref(x_nchw, w1, b1, w2, b2)

    vmem_limit = min(max(int(footprint * 1.25) + 2 * _MiB, 16 * _MiB), 60 * _MiB)

    x = x_nchw.reshape(N, C, HW)                     # free reshape, no transpose
    args = (x, w1.T, b1.reshape(1, C), w2.T, b2.reshape(1, C))

    try:
        # Resident weights single-buffered (constant index_map -> fetched once).
        fn = _build_call(N, C, HW, n_tile, hw_tile, x_nchw.dtype, vmem_limit,
                         single_buffer_weights=True)
        return fn(*args)
    except Exception:
        # Pallas versions without BlockSpec(pipeline_mode=...): retry with the
        # default double buffering (only costs extra VMEM on small resident blocks).
        fn = _build_call(N, C, HW, n_tile, hw_tile, x_nchw.dtype, vmem_limit,
                         single_buffer_weights=False)
        return fn(*args)


if __name__ == "__main__":
    N, C, H, W = 2, 32, 16, 16

    key = jax.random.PRNGKey(0)
    kx, k1, kb1, k2, kb2 = jax.random.split(key, 5)

    x = jax.random.normal(kx, (N, C, H, W), dtype=jnp.float32)
    # PyTorch Linear shapes: weight (out, in), bias (out,)
    bound = 1.0 / float(C) ** 0.5
    w1 = jax.random.uniform(k1, (C, C), jnp.float32, -bound, bound)
    b1 = jax.random.uniform(kb1, (C,), jnp.float32, -bound, bound)
    w2 = jax.random.uniform(k2, (C, C), jnp.float32, -bound, bound)
    b2 = jax.random.uniform(kb2, (C,), jnp.float32, -bound, bound)

    # Force the Pallas path so the kernel itself is exercised at this small size.
    out = jax.block_until_ready(box_head(x, w1, b1, w2, b2, use_pallas=True))
    ref = jax.block_until_ready(box_head_ref(x, w1, b1, w2, b2))

    assert out.shape == (N, C), out.shape
    err = float(jnp.max(jnp.abs(out - ref)))
    assert err < 1e-5, err
    print("KERNEL_OK")
</pallas_src>

<mosaic_0001>
module attributes {stable_mosaic.version = 11 : i64} {
  func.func @boxhead_kernel(%arg0: i32, %arg1: i32, %arg2: memref<2x32x256xf32, #tpu.memory_space<vmem>>, %arg3: memref<32x32xf32, #tpu.memory_space<vmem>>, %arg4: memref<1x32xf32, #tpu.memory_space<vmem>>, %arg5: memref<32x32xf32, #tpu.memory_space<vmem>>, %arg6: memref<1x32xf32, #tpu.memory_space<vmem>>, %arg7: memref<2x32xf32, #tpu.memory_space<vmem>>, %arg8: memref<2x32xf32, #tpu.memory_space<vmem>>) attributes {dimension_semantics = [#tpu.dimension_semantics<parallel>, #tpu.dimension_semantics<arbitrary>], iteration_bounds = array<i64: 1, 1>, scalar_prefetch = 0 : i64, scratch_operands = 1 : i64, tpu.core_type = #tpu.core_type<tc>, window_params = [{transform_indices = @transform_0, window_bounds = array<i64: 2, 32, 256>}, {pipeline_mode = #tpu.pipeline_mode<synchronous>, transform_indices = @transform_1, window_bounds = array<i64: 32, 32>}, {pipeline_mode = #tpu.pipeline_mode<synchronous>, transform_indices = @transform_2, window_bounds = array<i64: 1, 32>}, {pipeline_mode = #tpu.pipeline_mode<synchronous>, transform_indices = @transform_3, window_bounds = array<i64: 32, 32>}, {pipeline_mode = #tpu.pipeline_mode<synchronous>, transform_indices = @transform_4, window_bounds = array<i64: 1, 32>}, {transform_indices = @transform_5, window_bounds = array<i64: 2, 32>}]} {
    %c0_i32 = arith.constant 0 : i32
    %0 = arith.cmpi eq, %arg1, %c0_i32 : i32
    %1 = arith.extui %0 : i1 to i32
    %c0_i32_0 = arith.constant 0 : i32
    %2 = arith.cmpi ne, %1, %c0_i32_0 : i32
    scf.if %2 {
      %cst_9 = arith.constant 0.000000e+00 : f32
      %11 = vector.broadcast %cst_9 : f32 to vector<2x32xf32>
      %c0_10 = arith.constant 0 : index
      %c0_11 = arith.constant 0 : index
      %12 = vector.load %arg8[%c0_10, %c0_11] : memref<2x32xf32, #tpu.memory_space<vmem>>, vector<2x32xf32>
      tpu.vector_store %arg8[%c0_10, %c0_11], %11 {strides = array<i32>} : memref<2x32xf32, #tpu.memory_space<vmem>>, vector<2x32xf32>,
    } else {
    }
    %c0 = arith.constant 0 : index
    %c0_1 = arith.constant 0 : index
    %c0_2 = arith.constant 0 : index
    %3 = vector.load %arg2[%c0, %c0_1, %c0_2] : memref<2x32x256xf32, #tpu.memory_space<vmem>>, vector<2x32x256xf32>
    %c0_3 = arith.constant 0 : index
    %c0_4 = arith.constant 0 : index
    %4 = vector.load %arg8[%c0_3, %c0_4] : memref<2x32xf32, #tpu.memory_space<vmem>>, vector<2x32xf32>
    %cst = arith.constant dense<0.000000e+00> : vector<2x32xf32>
    %5 = vector.multi_reduction <add>, %3, %cst [2] : vector<2x32x256xf32> to vector<2x32xf32>
    %6 = arith.addf %4, %5 : vector<2x32xf32>
    %c0_5 = arith.constant 0 : index
    %c0_6 = arith.constant 0 : index
    %7 = vector.load %arg8[%c0_5, %c0_6] : memref<2x32xf32, #tpu.memory_space<vmem>>, vector<2x32xf32>
    tpu.vector_store %arg8[%c0_5, %c0_6], %6 {strides = array<i32>} : memref<2x32xf32, #tpu.memory_space<vmem>>, vector<2x32xf32>,
    %c0_i32_7 = arith.constant 0 : i32
    %8 = arith.cmpi eq, %arg1, %c0_i32_7 : i32
    %9 = arith.extui %8 : i1 to i32
    %c0_i32_8 = arith.constant 0 : i32
    %10 = arith.cmpi ne, %9, %c0_i32_8 : i32
    scf.if %10 {
      %c0_9 = arith.constant 0 : index
      %c0_10 = arith.constant 0 : index
      %11 = vector.load %arg8[%c0_9, %c0_10] : memref<2x32xf32, #tpu.memory_space<vmem>>, vector<2x32xf32>
      %cst_11 = arith.constant 3.906250e-03 : f32
      %12 = vector.broadcast %cst_11 : f32 to vector<2x32xf32>
      %13 = arith.mulf %11, %12 : vector<2x32xf32>
      %c0_12 = arith.constant 0 : index
      %c0_13 = arith.constant 0 : index
      %14 = vector.load %arg3[%c0_12, %c0_13] : memref<32x32xf32, #tpu.memory_space<vmem>>, vector<32x32xf32>
      %cst_14 = arith.constant dense<0.000000e+00> : vector<2x32xf32>
      %15 = tpu.matmul %13, %14, %cst_14 {dimension_numbers = #tpu.dot_dimension_numbers<[1], [0], [0], [1], [0, 0, 1, 1], [], []>} : vector<2x32xf32>, vector<32x32xf32>, vector<2x32xf32> -> vector<2x32xf32>
      %c0_15 = arith.constant 0 : index
      %c0_16 = arith.constant 0 : index
      %16 = vector.load %arg4[%c0_15, %c0_16] : memref<1x32xf32, #tpu.memory_space<vmem>>, vector<1x32xf32>
      %17 = vector.broadcast %16 : vector<1x32xf32> to vector<2x32xf32>
      %18 = arith.addf %15, %17 : vector<2x32xf32>
      %cst_17 = arith.constant 0.000000e+00 : f32
      %19 = vector.broadcast %cst_17 : f32 to vector<2x32xf32>
      %20 = arith.subf %19, %18 : vector<2x32xf32>
      %21 = math.exp %20 : vector<2x32xf32>
      %cst_18 = arith.constant 1.000000e+00 : f32
      %22 = vector.broadcast %cst_18 : f32 to vector<2x32xf32>
      %23 = arith.addf %22, %21 : vector<2x32xf32>
      %cst_19 = arith.constant 1.000000e+00 : f32
      %24 = vector.broadcast %cst_19 : f32 to vector<2x32xf32>
      %25 = arith.divf %24, %23 : vector<2x32xf32>
      %26 = arith.mulf %18, %25 : vector<2x32xf32>
      %c0_20 = arith.constant 0 : index
      %c0_21 = arith.constant 0 : index
      %27 = vector.load %arg5[%c0_20, %c0_21] : memref<32x32xf32, #tpu.memory_space<vmem>>, vector<32x32xf32>
      %cst_22 = arith.constant dense<0.000000e+00> : vector<2x32xf32>
      %28 = tpu.matmul %26, %27, %cst_22 {dimension_numbers = #tpu.dot_dimension_numbers<[1], [0], [0], [1], [0, 0, 1, 1], [], []>} : vector<2x32xf32>, vector<32x32xf32>, vector<2x32xf32> -> vector<2x32xf32>
      %c0_23 = arith.constant 0 : index
      %c0_24 = arith.constant 0 : index
      %29 = vector.load %arg6[%c0_23, %c0_24] : memref<1x32xf32, #tpu.memory_space<vmem>>, vector<1x32xf32>
      %30 = vector.broadcast %29 : vector<1x32xf32> to vector<2x32xf32>
      %31 = arith.addf %28, %30 : vector<2x32xf32>
      %cst_25 = arith.constant 0.000000e+00 : f32
      %32 = vector.broadcast %cst_25 : f32 to vector<2x32xf32>
      %33 = arith.subf %32, %31 : vector<2x32xf32>
      %34 = math.exp %33 : vector<2x32xf32>
      %cst_26 = arith.constant 1.000000e+00 : f32
      %35 = vector.broadcast %cst_26 : f32 to vector<2x32xf32>
      %36 = arith.addf %35, %34 : vector<2x32xf32>
      %cst_27 = arith.constant 1.000000e+00 : f32
      %37 = vector.broadcast %cst_27 : f32 to vector<2x32xf32>
      %38 = arith.divf %37, %36 : vector<2x32xf32>
      %39 = arith.mulf %31, %38 : vector<2x32xf32>
      %c0_28 = arith.constant 0 : index
      %c0_29 = arith.constant 0 : index
      %40 = vector.load %arg7[%c0_28, %c0_29] : memref<2x32xf32, #tpu.memory_space<vmem>>, vector<2x32xf32>
      tpu.vector_store %arg7[%c0_28, %c0_29], %39 {strides = array<i32>} : memref<2x32xf32, #tpu.memory_space<vmem>>, vector<2x32xf32>,
    } else {
    }
    return
  }
  func.func @transform_0(%arg0: i32, %arg1: i32) -> (i32, i32, i32) {
    %c0_i32 = arith.constant 0 : i32
    %c0_i32_0 = arith.constant 0 : i32
    return %arg0, %c0_i32, %arg1 : i32, i32, i32
  }
  func.func @transform_1(%arg0: i32, %arg1: i32) -> (i32, i32) {
    %c0_i32 = arith.constant 0 : i32
    %c0_i32_0 = arith.constant 0 : i32
    %c0_i32_1 = arith.constant 0 : i32
    return %c0_i32, %c0_i32_0 : i32, i32
  }
  func.func @transform_2(%arg0: i32, %arg1: i32) -> (i32, i32) {
    %c0_i32 = arith.constant 0 : i32
    %c0_i32_0 = arith.constant 0 : i32
    %c0_i32_1 = arith.constant 0 : i32
    return %c0_i32, %c0_i32_0 : i32, i32
  }
  func.func @transform_3(%arg0: i32, %arg1: i32) -> (i32, i32) {
    %c0_i32 = arith.constant 0 : i32
    %c0_i32_0 = arith.constant 0 : i32
    %c0_i32_1 = arith.constant 0 : i32
    return %c0_i32, %c0_i32_0 : i32, i32
  }
  func.func @transform_4(%arg0: i32, %arg1: i32) -> (i32, i32) {
    %c0_i32 = arith.constant 0 : i32
    %c0_i32_0 = arith.constant 0 : i32
    %c0_i32_1 = arith.constant 0 : i32
    return %c0_i32, %c0_i32_0 : i32, i32
  }
  func.func @transform_5(%arg0: i32, %arg1: i32) -> (i32, i32) {
    %c0_i32 = arith.constant 0 : i32
    %c0_i32_0 = arith.constant 0 : i32
    return %arg0, %c0_i32 : i32, i32
  }
}

module attributes {stable_mosaic.version = 11 : i64} {
  func.func @boxhead_kernel(%arg0: i32, %arg1: i32, %arg2: memref<2x32x256xf32, #tpu.memory_space<vmem>>, %arg3: memref<32x32xf32, #tpu.memory_space<vmem>>, %arg4: memref<1x32xf32, #tpu.memory_space<vmem>>, %arg5: memref<32x32xf32, #tpu.memory_space<vmem>>, %arg6: memref<1x32xf32, #tpu.memory_space<vmem>>, %arg7: memref<2x32xf32, #tpu.memory_space<vmem>>, %arg8: memref<2x32xf32, #tpu.memory_space<vmem>>) attributes {dimension_semantics = [#tpu.dimension_semantics<parallel>, #tpu.dimension_semantics<arbitrary>], iteration_bounds = array<i64: 1, 1>, scalar_prefetch = 0 : i64, scratch_operands = 1 : i64, tpu.core_type = #tpu.core_type<tc>, window_params = [{transform_indices = @transform_0, window_bounds = array<i64: 2, 32, 256>}, {pipeline_mode = #tpu.pipeline_mode<synchronous>, transform_indices = @transform_1, window_bounds = array<i64: 32, 32>}, {pipeline_mode = #tpu.pipeline_mode<synchronous>, transform_indices = @transform_2, window_bounds = array<i64: 1, 32>}, {pipeline_mode = #tpu.pipeline_mode<synchronous>, transform_indices = @transform_3, window_bounds = array<i64: 32, 32>}, {pipeline_mode = #tpu.pipeline_mode<synchronous>, transform_indices = @transform_4, window_bounds = array<i64: 1, 32>}, {transform_indices = @transform_5, window_bounds = array<i64: 2, 32>}]} {
    %c0_i32 = arith.constant 0 : i32
    %0 = arith.cmpi eq, %arg1, %c0_i32 : i32
    %1 = arith.extui %0 : i1 to i32
    %c0_i32_0 = arith.constant 0 : i32
    %2 = arith.cmpi ne, %1, %c0_i32_0 : i32
    scf.if %2 {
      %cst_9 = arith.constant 0.000000e+00 : f32
      %11 = vector.broadcast %cst_9 : f32 to vector<2x32xf32>
      %c0_10 = arith.constant 0 : index
      %c0_11 = arith.constant 0 : index
      %12 = vector.load %arg8[%c0_10, %c0_11] : memref<2x32xf32, #tpu.memory_space<vmem>>, vector<2x32xf32>
      tpu.vector_store %arg8[%c0_10, %c0_11], %11 {strides = array<i32>} : memref<2x32xf32, #tpu.memory_space<vmem>>, vector<2x32xf32>,
    } else {
    }
    %c0 = arith.constant 0 : index
    %c0_1 = arith.constant 0 : index
    %c0_2 = arith.constant 0 : index
    %3 = vector.load %arg2[%c0, %c0_1, %c0_2] : memref<2x32x256xf32, #tpu.memory_space<vmem>>, vector<2x32x256xf32>
    %c0_3 = arith.constant 0 : index
    %c0_4 = arith.constant 0 : index
    %4 = vector.load %arg8[%c0_3, %c0_4] : memref<2x32xf32, #tpu.memory_space<vmem>>, vector<2x32xf32>
    %cst = arith.constant dense<0.000000e+00> : vector<2x32xf32>
    %5 = vector.multi_reduction <add>, %3, %cst [2] : vector<2x32x256xf32> to vector<2x32xf32>
    %6 = arith.addf %4, %5 : vector<2x32xf32>
    %c0_5 = arith.constant 0 : index
    %c0_6 = arith.constant 0 : index
    %7 = vector.load %arg8[%c0_5, %c0_6] : memref<2x32xf32, #tpu.memory_space<vmem>>, vector<2x32xf32>
    tpu.vector_store %arg8[%c0_5, %c0_6], %6 {strides = array<i32>} : memref<2x32xf32, #tpu.memory_space<vmem>>, vector<2x32xf32>,
    %c0_i32_7 = arith.constant 0 : i32
    %8 = arith.cmpi eq, %arg1, %c0_i32_7 : i32
    %9 = arith.extui %8 : i1 to i32
    %c0_i32_8 = arith.constant 0 : i32
    %10 = arith.cmpi ne, %9, %c0_i32_8 : i32
    scf.if %10 {
      %c0_9 = arith.constant 0 : index
      %c0_10 = arith.constant 0 : index
      %11 = vector.load %arg8[%c0_9, %c0_10] : memref<2x32xf32, #tpu.memory_space<vmem>>, vector<2x32xf32>
      %cst_11 = arith.constant 3.906250e-03 : f32
      %12 = vector.broadcast %cst_11 : f32 to vector<2x32xf32>
      %13 = arith.mulf %11, %12 : vector<2x32xf32>
      %c0_12 = arith.constant 0 : index
      %c0_13 = arith.constant 0 : index
      %14 = vector.load %arg3[%c0_12, %c0_13] : memref<32x32xf32, #tpu.memory_space<vmem>>, vector<32x32xf32>
      %cst_14 = arith.constant dense<0.000000e+00> : vector<2x32xf32>
      %15 = tpu.matmul %13, %14, %cst_14 {dimension_numbers = #tpu.dot_dimension_numbers<[1], [0], [0], [1], [0, 0, 1, 1], [], []>} : vector<2x32xf32>, vector<32x32xf32>, vector<2x32xf32> -> vector<2x32xf32>
      %c0_15 = arith.constant 0 : index
      %c0_16 = arith.constant 0 : index
      %16 = vector.load %arg4[%c0_15, %c0_16] : memref<1x32xf32, #tpu.memory_space<vmem>>, vector<1x32xf32>
      %17 = vector.broadcast %16 : vector<1x32xf32> to vector<2x32xf32>
      %18 = arith.addf %15, %17 : vector<2x32xf32>
      %cst_17 = arith.constant 0.000000e+00 : f32
      %19 = vector.broadcast %cst_17 : f32 to vector<2x32xf32>
      %20 = arith.subf %19, %18 : vector<2x32xf32>
      %21 = math.exp %20 : vector<2x32xf32>
      %cst_18 = arith.constant 1.000000e+00 : f32
      %22 = vector.broadcast %cst_18 : f32 to vector<2x32xf32>
      %23 = arith.addf %22, %21 : vector<2x32xf32>
      %cst_19 = arith.constant 1.000000e+00 : f32
      %24 = vector.broadcast %cst_19 : f32 to vector<2x32xf32>
      %25 = arith.divf %24, %23 : vector<2x32xf32>
      %26 = arith.mulf %18, %25 : vector<2x32xf32>
      %c0_20 = arith.constant 0 : index
      %c0_21 = arith.constant 0 : index
      %27 = vector.load %arg5[%c0_20, %c0_21] : memref<32x32xf32, #tpu.memory_space<vmem>>, vector<32x32xf32>
      %cst_22 = arith.constant dense<0.000000e+00> : vector<2x32xf32>
      %28 = tpu.matmul %26, %27, %cst_22 {dimension_numbers = #tpu.dot_dimension_numbers<[1], [0], [0], [1], [0, 0, 1, 1], [], []>} : vector<2x32xf32>, vector<32x32xf32>, vector<2x32xf32> -> vector<2x32xf32>
      %c0_23 = arith.constant 0 : index
      %c0_24 = arith.constant 0 : index
      %29 = vector.load %arg6[%c0_23, %c0_24] : memref<1x32xf32, #tpu.memory_space<vmem>>, vector<1x32xf32>
      %30 = vector.broadcast %29 : vector<1x32xf32> to vector<2x32xf32>
      %31 = arith.addf %28, %30 : vector<2x32xf32>
      %cst_25 = arith.constant 0.000000e+00 : f32
      %32 = vector.broadcast %cst_25 : f32 to vector<2x32xf32>
      %33 = arith.subf %32, %31 : vector<2x32xf32>
      %34 = math.exp %33 : vector<2x32xf32>
      %cst_26 = arith.constant 1.000000e+00 : f32
      %35 = vector.broadcast %cst_26 : f32 to vector<2x32xf32>
      %36 = arith.addf %35, %34 : vector<2x32xf32>
      %cst_27 = arith.constant 1.000000e+00 : f32
      %37 = vector.broadcast %cst_27 : f32 to vector<2x32xf32>
      %38 = arith.divf %37, %36 : vector<2x32xf32>
      %39 = arith.mulf %31, %38 : vector<2x32xf32>
      %c0_28 = arith.constant 0 : index
      %c0_29 = arith.constant 0 : index
      %40 = vector.load %arg7[%c0_28, %c0_29] : memref<2x32xf32, #tpu.memory_space<vmem>>, vector<2x32xf32>
      tpu.vector_store %arg7[%c0_28, %c0_29], %39 {strides = array<i32>} : memref<2x32xf32, #tpu.memory_space<vmem>>, vector<2x32xf32>,
    } else {
    }
    return
  }
  func.func @transform_0(%arg0: i32, %arg1: i32) -> (i32, i32, i32) {
    %c0_i32 = arith.constant 0 : i32
    %c0_i32_0 = arith.constant 0 : i32
    return %arg0, %c0_i32, %arg1 : i32, i32, i32
  }
  func.func @transform_1(%arg0: i32, %arg1: i32) -> (i32, i32) {
    %c0_i32 = arith.constant 0 : i32
    %c0_i32_0 = arith.constant 0 : i32
    %c0_i32_1 = arith.constant 0 : i32
    return %c0_i32, %c0_i32_0 : i32, i32
  }
  func.func @transform_2(%arg0: i32, %arg1: i32) -> (i32, i32) {
    %c0_i32 = arith.constant 0 : i32
    %c0_i32_0 = arith.constant 0 : i32
    %c0_i32_1 = arith.constant 0 : i32
    return %c0_i32, %c0_i32_0 : i32, i32
  }
  func.func @transform_3(%arg0: i32, %arg1: i32) -> (i32, i32) {
    %c0_i32 = arith.constant 0 : i32
    %c0_i32_0 = arith.constant 0 : i32
    %c0_i32_1 = arith.constant 0 : i32
    return %c0_i32, %c0_i32_0 : i32, i32
  }
  func.func @transform_4(%arg0: i32, %arg1: i32) -> (i32, i32) {
    %c0_i32 = arith.constant 0 : i32
    %c0_i32_0 = arith.constant 0 : i32
    %c0_i32_1 = arith.constant 0 : i32
    return %c0_i32, %c0_i32_0 : i32, i32
  }
  func.func @transform_5(%arg0: i32, %arg1: i32) -> (i32, i32) {
    %c0_i32 = arith.constant 0 : i32
    %c0_i32_0 = arith.constant 0 : i32
    return %arg0, %c0_i32 : i32, i32
  }
}

</mosaic_0001>

<llo_original>
// kernel: tpu_custom_call.1
$region0: #{tpu_custom_call.1}
  #allocation0 [shape = 'u32[]', space=smem, size = 0x4, offset = 0x4, fixed_abs, tag = 'smem constant byte address 0x4 - core index']
  #allocation1 [shape = 'u32[144,128]{1,0:T(1,128)}', space=vmem, size = 0x12000, scoped, tag = 'internal scratch']
  #allocation2 [shape = 'f32[2,32]{1,0:T(2,128)}', space=vmem, size = 0x400, scoped, tag = 'scratch operand']
  %s0 = inlined_call_operand.hbm [shape: f32[2,32,256], index: 0, kind: input, shape index: {}]
  %s1 = inlined_call_operand.hbm [shape: f32[32,32], index: 1, kind: input, shape index: {}]
  %s2 = inlined_call_operand.vmem [shape: f32[1,32], index: 2, kind: input, shape index: {}]
  %s3 = inlined_call_operand.hbm [shape: f32[32,32], index: 3, kind: input, shape index: {}]
  %s4 = inlined_call_operand.vmem [shape: f32[1,32], index: 4, kind: input, shape index: {}]
  %s5 = inlined_call_operand.hbm [shape: f32[2,32], index: 5, kind: output, shape index: {}]
  %s6 = sld [smem:[#allocation0]]
  $region50: #{tpu_custom_call.1} parent=0
    _
  %s8 = ssub.s32 1, %s6
  %s9 = scalar_select 0, %s8, %s6
  $region1: #{tpu_custom_call.1} parent=0
    #allocation3 [shape = 'u8[65536]{0}', space=vmem, size = 0x10000, scoped, tag = 'input window, operand 0, single buffered']
    #allocation4 [shape = 's32[1]{0}', space=sflag, size = 0x4, scoped, tag = 'scoped memory for tpu_custom_call.1']
    #allocation5 [shape = 's32[1]{0}', space=sflag, size = 0x4, scoped, tag = 'scoped memory for tpu_custom_call.1']
    #allocation6 [shape = 'u8[16384]{0}', space=vmem, size = 0x4000, scoped, tag = 'input window, operand 1, single buffered']
    #allocation7 [shape = 's32[1]{0}', space=sflag, size = 0x4, scoped, tag = 'scoped memory for tpu_custom_call.1']
    #allocation8 [shape = 'u8[16384]{0}', space=vmem, size = 0x4000, scoped, tag = 'input window, operand 3, single buffered']
    #allocation9 [shape = 'u8[1024]{0}', space=vmem, size = 0x400, scoped, tag = 'output window, operand 0, single buffered']
    %10 = vsyncpa [#allocation4], 0
    %11 = vsyncpa [#allocation7], 0
    %12 = vsyncpa [#allocation5], 0
    // Predicated region
    $region2: #{tpu_custom_call.1} parent=1 // pred_check
      _
    $region3: #{tpu_custom_call.1} parent=1 // pred_check_branch
      %14 = sbr.rel (0) target = $region5
    $region4: #{tpu_custom_call.1} parent=1 // pred_region
      %s16 = ssub.s32 2048, 2048
      %17 = vsyncadd [#allocation4], %s16
      %s18 = sshll.u32 [#allocation3], 4
      %s19 = int_to_ptr.vmem [resolvable:$true] %s18
      %24 = dma.hbm_to_vmem [thread:$0]  %s0, 2048, %s19, [#allocation4], 256, 256, 16
    $region5: #{tpu_custom_call.1} parent=1 // pred_fallthru
      _
    // Predicated region
    $region6: #{tpu_custom_call.1} parent=1 // pred_check
      _
    $region7: #{tpu_custom_call.1} parent=1 // pred_check_branch
      %26 = sbr.rel (0) target = $region9
    $region8: #{tpu_custom_call.1} parent=1 // pred_region
      %s28 = ssub.s32 512, 512
      %29 = vsyncadd [#allocation7], %s28
      %s30 = sshll.u32 [#allocation6], 4
      %s31 = int_to_ptr.vmem [resolvable:$true] %s30
      %36 = dma.hbm_to_vmem [thread:$0]  %s1, 512, %s31, [#allocation7], 128, 128, 8
    $region9: #{tpu_custom_call.1} parent=1 // pred_fallthru
      _
    // Predicated region
    $region10: #{tpu_custom_call.1} parent=1 // pred_check
      _
    $region11: #{tpu_custom_call.1} parent=1 // pred_check_branch
      %38 = sbr.rel (0) target = $region13
    $region12: #{tpu_custom_call.1} parent=1 // pred_region
      _
    $region13: #{tpu_custom_call.1} parent=1 // pred_fallthru
      _
    // Predicated region
    $region14: #{tpu_custom_call.1} parent=1 // pred_check
      _
    $region15: #{tpu_custom_call.1} parent=1 // pred_check_branch
      %40 = sbr.rel (0) target = $region17
    $region16: #{tpu_custom_call.1} parent=1 // pred_region
      %s42 = ssub.s32 512, 512
      %43 = vsyncadd [#allocation7], %s42
      %s44 = sshll.u32 [#allocation8], 4
      %s45 = int_to_ptr.vmem [resolvable:$true] %s44
      %50 = dma.hbm_to_vmem [thread:$0]  %s3, 512, %s45, [#allocation7], 128, 128, 8
    $region17: #{tpu_custom_call.1} parent=1 // pred_fallthru
      _
    // Predicated region
    $region18: #{tpu_custom_call.1} parent=1 // pred_check
      _
    $region19: #{tpu_custom_call.1} parent=1 // pred_check_branch
      %52 = sbr.rel (0) target = $region21
    $region20: #{tpu_custom_call.1} parent=1 // pred_region
      _
    $region21: #{tpu_custom_call.1} parent=1 // pred_fallthru
      _
    // Predicated region
    $region22: #{tpu_custom_call.1} parent=1 // pred_check
      _
    $region23: #{tpu_custom_call.1} parent=1 // pred_check_branch
      %54 = sbr.rel (0) target = $region25
    $region24: #{tpu_custom_call.1} parent=1 // pred_region
      %55 = dma.done [#allocation4], 2048
    $region25: #{tpu_custom_call.1} parent=1 // pred_fallthru
      _
    // Predicated region
    $region26: #{tpu_custom_call.1} parent=1 // pred_check
      _
    $region27: #{tpu_custom_call.1} parent=1 // pred_check_branch
      %57 = sbr.rel (0) target = $region29
    $region28: #{tpu_custom_call.1} parent=1 // pred_region
      %58 = dma.done [#allocation7], 512
    $region29: #{tpu_custom_call.1} parent=1 // pred_fallthru
      _
    // Predicated region
    $region30: #{tpu_custom_call.1} parent=1 // pred_check
      _
    $region31: #{tpu_custom_call.1} parent=1 // pred_check_branch
      %60 = sbr.rel (0) target = $region33
    $region32: #{tpu_custom_call.1} parent=1 // pred_region
      %61 = dma.done [#allocation7], 512
    $region33: #{tpu_custom_call.1} parent=1 // pred_fallthru
      _
    %p62 = scmp.eq.s32.totalorder 0, 0
    // Predicated region
    $region34: #{tpu_custom_call.1} parent=1 // pred_check
      %p63 = pneg %p62
    $region35: #{tpu_custom_call.1} parent=1 // pred_check_branch
      %65 = sbr.rel (%p63) target = $region37
    $region36: #{tpu_custom_call.1} parent=1 // pred_region
      %vm66 = vcmask 254976
      %67 = vst.msk [vmem:[#allocation2] sm:$0x3] %vm66, 0.0
    $region37: #{tpu_custom_call.1} parent=1 // pred_fallthru
      _
    %v68 = vld [vmem:[#allocation3] sm:$0xff]
    %v69 = vld [vmem:[#allocation3 + $0x8] sm:$0xff]
    %v70 = vld [vmem:[#allocation3 + $0x10] sm:$0xff]
    %v71 = vld [vmem:[#allocation3 + $0x18] sm:$0xff]
    %v72 = vld [vmem:[#allocation3 + $0x20] sm:$0xff]
    %v73 = vld [vmem:[#allocation3 + $0x28] sm:$0xff]
    %v74 = vld [vmem:[#allocation3 + $0x30] sm:$0xff]
    %v75 = vld [vmem:[#allocation3 + $0x38] sm:$0xff]
    %v76 = vld [vmem:[#allocation3 + $0x40] sm:$0xff]
    %v77 = vld [vmem:[#allocation3 + $0x48] sm:$0xff]
    %v78 = vld [vmem:[#allocation3 + $0x50] sm:$0xff]
    %v79 = vld [vmem:[#allocation3 + $0x58] sm:$0xff]
    %v80 = vld [vmem:[#allocation3 + $0x60] sm:$0xff]
    %v81 = vld [vmem:[#allocation3 + $0x68] sm:$0xff]
    %v82 = vld [vmem:[#allocation3 + $0x70] sm:$0xff]
    %v83 = vld [vmem:[#allocation3 + $0x78] sm:$0xff]
    %v84 = vld [vmem:[#allocation2] sm:$0x3]
    %v85 = vadd.f32 %v68, %v69
    %86 = vadd.xlane.f32.xlu0 %v85
    %v87 = vpop.xlane.xlu0 %86
    %v88 = vadd.f32 %v70, %v71
    %89 = vadd.xlane.f32.xlu0 %v88
    %v90 = vpop.xlane.xlu0 %89
    %v91 = vadd.f32 %v72, %v73
    %92 = vadd.xlane.f32.xlu0 %v91
    %v93 = vpop.xlane.xlu0 %92
    %v94 = vadd.f32 %v74, %v75
    %95 = vadd.xlane.f32.xlu0 %v94
    %v96 = vpop.xlane.xlu0 %95
    %v97 = vadd.f32 %v76, %v77
    %98 = vadd.xlane.f32.xlu0 %v97
    %v99 = vpop.xlane.xlu0 %98
    %v100 = vadd.f32 %v78, %v79
    %101 = vadd.xlane.f32.xlu0 %v100
    %v102 = vpop.xlane.xlu0 %101
    %v103 = vadd.f32 %v80, %v81
    %104 = vadd.xlane.f32.xlu0 %v103
    %v105 = vpop.xlane.xlu0 %104
    %v106 = vadd.f32 %v82, %v83
    %107 = vadd.xlane.f32.xlu0 %v106
    %v108 = vpop.xlane.xlu0 %107
    %v117 = vlaneseq
    %v118 = vand.u32 %v117, 127
    %v119 = vlaneseq
    %v120 = vshrl.u32 %v119, 7
    %v121 = vsub.s32 %v118, %v120
    %v122 = vrot.slane %v87, %v121
    %v123 = vadd.s32 %v118, 4294967288
    %v124 = vlaneseq
    %v125 = vshrl.u32 %v124, 7
    %v126 = vsub.s32 %v123, %v125
    %v127 = vrot.slane %v90, %v126
    %vm128 = vcmask 130112
    %v129 = vsel %vm128, %v127, %v122
    %v130 = vadd.s32 %v118, 4294967280
    %v131 = vlaneseq
    %v132 = vshrl.u32 %v131, 7
    %v133 = vsub.s32 %v130, %v132
    %v134 = vrot.slane %v93, %v133
    %vm135 = vcmask 195712
    %v136 = vsel %vm135, %v134, %v129
    %v137 = vadd.s32 %v118, 4294967272
    %v138 = vlaneseq
    %v139 = vshrl.u32 %v138, 7
    %v140 = vsub.s32 %v137, %v139
    %v141 = vrot.slane %v96, %v140
    %vm142 = vcmask 261312
    %v143 = vsel %vm142, %v141, %v136
    %v144 = vlaneseq
    %v145 = vshrl.u32 %v144, 7
    %v146 = vsub.s32 %v118, %v145
    %v147 = vrot.slane %v99, %v146
    %v148 = vlaneseq
    %v149 = vshrl.u32 %v148, 7
    %v150 = vsub.s32 %v123, %v149
    %v151 = vrot.slane %v102, %v150
    %v152 = vsel %vm128, %v151, %v147
    %v153 = vlaneseq
    %v154 = vshrl.u32 %v153, 7
    %v155 = vsub.s32 %v130, %v154
    %v156 = vrot.slane %v105, %v155
    %v157 = vsel %vm135, %v156, %v152
    %v158 = vlaneseq
    %v159 = vshrl.u32 %v158, 7
    %v160 = vsub.s32 %v137, %v159
    %v161 = vrot.slane %v108, %v160
    %v162 = vsel %vm142, %v161, %v157
    %vm163 = vcmask 1041409
    %v164 = vsel %vm163, %v162, %v143
    %v166 = vadd.f32 %v84, %v164
    %vm167 = vcmask 254976
    %168 = vst.msk [vmem:[#allocation2] sm:$0x3] %vm167, %v166
    // Predicated region
    $region38: #{tpu_custom_call.1} parent=1 // pred_check
      %p169 = pneg %p62
    $region39: #{tpu_custom_call.1} parent=1 // pred_check_branch
      %171 = sbr.rel (%p169) target = $region41
    $region40: #{tpu_custom_call.1} parent=1 // pred_region
      %v172 = vld [vmem:[#allocation2] sm:$0x3]
      %v173 = vmul.f32 %v172, 0.00390625
      %v174 = vld [vmem:[#allocation6] sm:$0xff]
      %v175 = vld [vmem:[#allocation6 + $0x8] sm:$0xff]
      %v176 = vld [vmem:[#allocation6 + $0x10] sm:$0xff]
      %v177 = vld [vmem:[#allocation6 + $0x18] sm:$0xff]
      %v178 = vld [vmem:[%s2] sm:$0x1]
      %v180 = vlaneseq
      %v181 = vshrl.u32 %v180, 7
      %v182 = vsub.s32 0, %v181
      %v183 = vrot.slane %v178, %v182
      %vm185 = vcmask 261120
      %v187 = vsel %vm185, %v173, 0
      %189 = vmatprep.subr.mxu0 0.0
      %190 = vmatpush1.msra.mxu0 %v174
      %191 = vmatprep.subr.mxu0 0.0
      %192 = vmatpush1.msra.mxu0 %v175
      %193 = vmatprep.subr.mxu0 0.0
      %194 = vmatpush1.msra.mxu0 %v176
      %195 = vmatprep.subr.mxu0 0.0
      %196 = vmatpush1.msra.mxu0 %v177
      %197 = vmatprep.subr.mxu0 0.0
      %198 = vmatpush1.msra.mxu0 0.0
      %199 = vmatprep.subr.mxu0 0.0
      %200 = vmatpush1.msra.mxu0 0.0
      %201 = vmatprep.subr.mxu0 0.0
      %202 = vmatpush1.msra.mxu0 0.0
      %203 = vmatprep.subr.mxu0 0.0
      %204 = vmatpush1.msra.mxu0 0.0
      %205 = vmatprep.subr.mxu0 0.0
      %206 = vmatpush1.msra.mxu0 0.0
      %207 = vmatprep.subr.mxu0 0.0
      %208 = vmatpush1.msra.mxu0 0.0
      %209 = vmatprep.subr.mxu0 0.0
      %210 = vmatpush1.msra.mxu0 0.0
      %211 = vmatprep.subr.mxu0 0.0
      %212 = vmatpush1.msra.mxu0 0.0
      %213 = vmatprep.subr.mxu0 0.0
      %214 = vmatpush1.msra.mxu0 0.0
      %215 = vmatprep.subr.mxu0 0.0
      %216 = vmatpush1.msra.mxu0 0.0
      %217 = vmatprep.subr.mxu0 0.0
      %218 = vmatpush1.msra.mxu0 0.0
      %219 = vmatprep.subr.mxu0 0.0
      %220 = vmatpush1.msra.mxu0 0.0
      %221 = vmatprep.subr.mxu0 0.0
      %222 = vmatpush1.msra.mxu0 0.0
      %223 = vmatprep.subr.mxu0 0.0
      %224 = vmatpush1.msra.mxu0 0.0
      %225 = vmatprep.subr.mxu0 0.0
      %226 = vmatpush1.msra.mxu0 0.0
      %227 = vmatprep.subr.mxu0 0.0
      %228 = vmatpush1.msra.mxu0 0.0
      %229 = vmatprep.subr.mxu0 0.0
      %230 = vmatpush1.msra.mxu0 0.0
      %231 = vmatprep.subr.mxu0 0.0
      %232 = vmatpush1.msra.mxu0 0.0
      %233 = vmatprep.subr.mxu0 0.0
      %234 = vmatpush1.msra.mxu0 0.0
      %235 = vmatprep.subr.mxu0 0.0
      %236 = vmatpush1.msra.mxu0 0.0
      %237 = vmatprep.subr.mxu0 0.0
      %238 = vmatpush1.msra.mxu0 0.0
      %239 = vmatprep.subr.mxu0 0.0
      %240 = vmatpush1.msra.mxu0 0.0
      %241 = vmatprep.subr.mxu0 0.0
      %242 = vmatpush1.msra.mxu0 0.0
      %243 = vmatprep.subr.mxu0 0.0
      %244 = vmatpush1.msra.mxu0 0.0
      %245 = vmatprep.subr.mxu0 0.0
      %246 = vmatpush1.msra.mxu0 0.0
      %247 = vmatprep.subr.mxu0 0.0
      %248 = vmatpush1.msra.mxu0 0.0
      %249 = vmatprep.subr.mxu0 0.0
      %250 = vmatpush1.msra.mxu0 0.0
      %251 = vmatprep.subr.mxu0 0.0
      %252 = vmatpush1.msra.mxu0 0.0
      %253 = vmatprep.mubr.f32.mxu0 0.0
      %254 = vmatmul.mubr.f32.gmra.mrb[0].mxu0 %v187
      %v255 = vpop.f32.mrb[0].mxu0
      %v256 = vadd.f32 %v183, %v255
      %v257 = vpop.f32.mrb[0].mxu0
      %258 = vdwg.mxu0
      %v259 = vsub.f32 0.0, %v256
      %v260 = vmul.f32 %v259, 1.442695
      %v261 = vpow.pop %v260
      %v262 = vadd.f32 %v261, 1.0
      %v263 = vrcp.pop %v262
      %v264 = vmul.f32 1.0, %v263
      %v265 = vmul.f32 %v256, %v264
      %v266 = vld [vmem:[#allocation8] sm:$0xff]
      %v267 = vld [vmem:[#allocation8 + $0x8] sm:$0xff]
      %v268 = vld [vmem:[#allocation8 + $0x10] sm:$0xff]
      %v269 = vld [vmem:[#allocation8 + $0x18] sm:$0xff]
      %v270 = vld [vmem:[%s4] sm:$0x1]
      %v272 = vlaneseq
      %v273 = vshrl.u32 %v272, 7
      %v274 = vsub.s32 0, %v273
      %v275 = vrot.slane %v270, %v274
      %v278 = vsel %vm185, %v265, 0
      %280 = vmatprep.subr.mxu0 0.0
      %281 = vmatpush1.msra.mxu0 %v266
      %282 = vmatprep.subr.mxu0 0.0
      %283 = vmatpush1.msra.mxu0 %v267
      %284 = vmatprep.subr.mxu0 0.0
      %285 = vmatpush1.msra.mxu0 %v268
      %286 = vmatprep.subr.mxu0 0.0
      %287 = vmatpush1.msra.mxu0 %v269
      %288 = vmatprep.subr.mxu0 0.0
      %289 = vmatpush1.msra.mxu0 0.0
      %290 = vmatprep.subr.mxu0 0.0
      %291 = vmatpush1.msra.mxu0 0.0
      %292 = vmatprep.subr.mxu0 0.0
      %293 = vmatpush1.msra.mxu0 0.0
      %294 = vmatprep.subr.mxu0 0.0
      %295 = vmatpush1.msra.mxu0 0.0
      %296 = vmatprep.subr.mxu0 0.0
      %297 = vmatpush1.msra.mxu0 0.0
      %298 = vmatprep.subr.mxu0 0.0
      %299 = vmatpush1.msra.mxu0 0.0
      %300 = vmatprep.subr.mxu0 0.0
      %301 = vmatpush1.msra.mxu0 0.0
      %302 = vmatprep.subr.mxu0 0.0
      %303 = vmatpush1.msra.mxu0 0.0
      %304 = vmatprep.subr.mxu0 0.0
      %305 = vmatpush1.msra.mxu0 0.0
      %306 = vmatprep.subr.mxu0 0.0
      %307 = vmatpush1.msra.mxu0 0.0
      %308 = vmatprep.subr.mxu0 0.0
      %309 = vmatpush1.msra.mxu0 0.0
      %310 = vmatprep.subr.mxu0 0.0
      %311 = vmatpush1.msra.mxu0 0.0
      %312 = vmatprep.subr.mxu0 0.0
      %313 = vmatpush1.msra.mxu0 0.0
      %314 = vmatprep.subr.mxu0 0.0
      %315 = vmatpush1.msra.mxu0 0.0
      %316 = vmatprep.subr.mxu0 0.0
      %317 = vmatpush1.msra.mxu0 0.0
      %318 = vmatprep.subr.mxu0 0.0
      %319 = vmatpush1.msra.mxu0 0.0
      %320 = vmatprep.subr.mxu0 0.0
      %321 = vmatpush1.msra.mxu0 0.0
      %322 = vmatprep.subr.mxu0 0.0
      %323 = vmatpush1.msra.mxu0 0.0
      %324 = vmatprep.subr.mxu0 0.0
      %325 = vmatpush1.msra.mxu0 0.0
      %326 = vmatprep.subr.mxu0 0.0
      %327 = vmatpush1.msra.mxu0 0.0
      %328 = vmatprep.subr.mxu0 0.0
      %329 = vmatpush1.msra.mxu0 0.0
      %330 = vmatprep.subr.mxu0 0.0
      %331 = vmatpush1.msra.mxu0 0.0
      %332 = vmatprep.subr.mxu0 0.0
      %333 = vmatpush1.msra.mxu0 0.0
      %334 = vmatprep.subr.mxu0 0.0
      %335 = vmatpush1.msra.mxu0 0.0
      %336 = vmatprep.subr.mxu0 0.0
      %337 = vmatpush1.msra.mxu0 0.0
      %338 = vmatprep.subr.mxu0 0.0
      %339 = vmatpush1.msra.mxu0 0.0
      %340 = vmatprep.subr.mxu0 0.0
      %341 = vmatpush1.msra.mxu0 0.0
      %342 = vmatprep.subr.mxu0 0.0
      %343 = vmatpush1.msra.mxu0 0.0
      %344 = vmatprep.mubr.f32.mxu0 0.0
      %345 = vmatmul.mubr.f32.gmra.mrb[0].mxu0 %v278
      %v346 = vpop.f32.mrb[0].mxu0
      %v347 = vadd.f32 %v275, %v346
      %v348 = vpop.f32.mrb[0].mxu0
      %349 = vdwg.mxu0
      %v350 = vsub.f32 0.0, %v347
      %v351 = vmul.f32 %v350, 1.442695
      %v352 = vpow.pop %v351
      %v353 = vadd.f32 %v352, 1.0
      %v354 = vrcp.pop %v353
      %v355 = vmul.f32 1.0, %v354
      %v356 = vmul.f32 %v347, %v355
      %357 = vst.msk [vmem:[#allocation9] sm:$0x3] %vm167, %v356
    $region41: #{tpu_custom_call.1} parent=1 // pred_fallthru
      _
    // Predicated region
    $region42: #{tpu_custom_call.1} parent=1 // pred_check
      _
    $region43: #{tpu_custom_call.1} parent=1 // pred_check_branch
      %359 = sbr.rel (0) target = $region45
    $region44: #{tpu_custom_call.1} parent=1 // pred_region
      %s361 = ssub.s32 32, 32
      %362 = vsyncadd [#allocation5], %s361
      %s364 = sshll.u32 [#allocation9], 4
      %s365 = int_to_ptr.vmem [resolvable:$true] %s364
      %367 = dma.vmem_to_hbm [thread:$0]  %s365, 32, %s5, [#allocation5]
    $region45: #{tpu_custom_call.1} parent=1 // pred_fallthru
      _
    // Predicated region
    $region46: #{tpu_custom_call.1} parent=1 // pred_check
      _
    $region47: #{tpu_custom_call.1} parent=1 // pred_check_branch
      %369 = sbr.rel (0) target = $region49
    $region48: #{tpu_custom_call.1} parent=1 // pred_region
      %370 = dma.done [#allocation5], 32
    $region49: #{tpu_custom_call.1} parent=1 // pred_fallthru
      _
    %371 = vsyncpa [#allocation4], 1
    %372 = vsyncpa [#allocation7], 1
    %373 = vsyncpa [#allocation5], 1

// kernel: tpu_custom_call.1
$region0: #{tpu_custom_call.1}
  #allocation0 [shape = 'u32[]', space=smem, size = 0x4, offset = 0x4, fixed_abs, tag = 'smem constant byte address 0x4 - core index']
  #allocation1 [shape = 'u32[144,128]{1,0:T(1,128)}', space=vmem, size = 0x12000, scoped, tag = 'internal scratch']
  #allocation2 [shape = 'f32[2,32]{1,0:T(2,128)}', space=vmem, size = 0x400, scoped, tag = 'scratch operand']
  %s0 = inlined_call_operand.hbm [shape: f32[2,32,256], index: 0, kind: input, shape index: {}]
  %s1 = inlined_call_operand.hbm [shape: f32[32,32], index: 1, kind: input, shape index: {}]
  %s2 = inlined_call_operand.vmem [shape: f32[1,32], index: 2, kind: input, shape index: {}]
  %s3 = inlined_call_operand.hbm [shape: f32[32,32], index: 3, kind: input, shape index: {}]
  %s4 = inlined_call_operand.vmem [shape: f32[1,32], index: 4, kind: input, shape index: {}]
  %s5 = inlined_call_operand.hbm [shape: f32[2,32], index: 5, kind: output, shape index: {}]
  %s6 = sld [smem:[#allocation0]]
  $region50: #{tpu_custom_call.1} parent=0
    _
  %s8 = ssub.s32 1, %s6
  %s9 = scalar_select 0, %s8, %s6
  $region1: #{tpu_custom_call.1} parent=0
    #allocation3 [shape = 'u8[65536]{0}', space=vmem, size = 0x10000, scoped, tag = 'input window, operand 0, single buffered']
    #allocation4 [shape = 's32[1]{0}', space=sflag, size = 0x4, scoped, tag = 'scoped memory for tpu_custom_call.1']
    #allocation5 [shape = 's32[1]{0}', space=sflag, size = 0x4, scoped, tag = 'scoped memory for tpu_custom_call.1']
    #allocation6 [shape = 'u8[16384]{0}', space=vmem, size = 0x4000, scoped, tag = 'input window, operand 1, single buffered']
    #allocation7 [shape = 's32[1]{0}', space=sflag, size = 0x4, scoped, tag = 'scoped memory for tpu_custom_call.1']
    #allocation8 [shape = 'u8[16384]{0}', space=vmem, size = 0x4000, scoped, tag = 'input window, operand 3, single buffered']
    #allocation9 [shape = 'u8[1024]{0}', space=vmem, size = 0x400, scoped, tag = 'output window, operand 0, single buffered']
    %10 = vsyncpa [#allocation4], 0
    %11 = vsyncpa [#allocation7], 0
    %12 = vsyncpa [#allocation5], 0
    // Predicated region
    $region2: #{tpu_custom_call.1} parent=1 // pred_check
      _
    $region3: #{tpu_custom_call.1} parent=1 // pred_check_branch
      %14 = sbr.rel (0) target = $region5
    $region4: #{tpu_custom_call.1} parent=1 // pred_region
      %s16 = ssub.s32 2048, 2048
      %17 = vsyncadd [#allocation4], %s16
      %s18 = sshll.u32 [#allocation3], 4
      %s19 = int_to_ptr.vmem [resolvable:$true] %s18
      %24 = dma.hbm_to_vmem [thread:$0]  %s0, 2048, %s19, [#allocation4], 256, 256, 16
    $region5: #{tpu_custom_call.1} parent=1 // pred_fallthru
      _
    // Predicated region
    $region6: #{tpu_custom_call.1} parent=1 // pred_check
      _
    $region7: #{tpu_custom_call.1} parent=1 // pred_check_branch
      %26 = sbr.rel (0) target = $region9
    $region8: #{tpu_custom_call.1} parent=1 // pred_region
      %s28 = ssub.s32 512, 512
      %29 = vsyncadd [#allocation7], %s28
      %s30 = sshll.u32 [#allocation6], 4
      %s31 = int_to_ptr.vmem [resolvable:$true] %s30
      %36 = dma.hbm_to_vmem [thread:$0]  %s1, 512, %s31, [#allocation7], 128, 128, 8
    $region9: #{tpu_custom_call.1} parent=1 // pred_fallthru
      _
    // Predicated region
    $region10: #{tpu_custom_call.1} parent=1 // pred_check
      _
    $region11: #{tpu_custom_call.1} parent=1 // pred_check_branch
      %38 = sbr.rel (0) target = $region13
    $region12: #{tpu_custom_call.1} parent=1 // pred_region
      _
    $region13: #{tpu_custom_call.1} parent=1 // pred_fallthru
      _
    // Predicated region
    $region14: #{tpu_custom_call.1} parent=1 // pred_check
      _
    $region15: #{tpu_custom_call.1} parent=1 // pred_check_branch
      %40 = sbr.rel (0) target = $region17
    $region16: #{tpu_custom_call.1} parent=1 // pred_region
      %s42 = ssub.s32 512, 512
      %43 = vsyncadd [#allocation7], %s42
      %s44 = sshll.u32 [#allocation8], 4
      %s45 = int_to_ptr.vmem [resolvable:$true] %s44
      %50 = dma.hbm_to_vmem [thread:$0]  %s3, 512, %s45, [#allocation7], 128, 128, 8
    $region17: #{tpu_custom_call.1} parent=1 // pred_fallthru
      _
    // Predicated region
    $region18: #{tpu_custom_call.1} parent=1 // pred_check
      _
    $region19: #{tpu_custom_call.1} parent=1 // pred_check_branch
      %52 = sbr.rel (0) target = $region21
    $region20: #{tpu_custom_call.1} parent=1 // pred_region
      _
    $region21: #{tpu_custom_call.1} parent=1 // pred_fallthru
      _
    // Predicated region
    $region22: #{tpu_custom_call.1} parent=1 // pred_check
      _
    $region23: #{tpu_custom_call.1} parent=1 // pred_check_branch
      %54 = sbr.rel (0) target = $region25
    $region24: #{tpu_custom_call.1} parent=1 // pred_region
      %55 = dma.done [#allocation4], 2048
    $region25: #{tpu_custom_call.1} parent=1 // pred_fallthru
      _
    // Predicated region
    $region26: #{tpu_custom_call.1} parent=1 // pred_check
      _
    $region27: #{tpu_custom_call.1} parent=1 // pred_check_branch
      %57 = sbr.rel (0) target = $region29
    $region28: #{tpu_custom_call.1} parent=1 // pred_region
      %58 = dma.done [#allocation7], 512
    $region29: #{tpu_custom_call.1} parent=1 // pred_fallthru
      _
    // Predicated region
    $region30: #{tpu_custom_call.1} parent=1 // pred_check
      _
    $region31: #{tpu_custom_call.1} parent=1 // pred_check_branch
      %60 = sbr.rel (0) target = $region33
    $region32: #{tpu_custom_call.1} parent=1 // pred_region
      %61 = dma.done [#allocation7], 512
    $region33: #{tpu_custom_call.1} parent=1 // pred_fallthru
      _
    %p62 = scmp.eq.s32.totalorder 0, 0
    // Predicated region
    $region34: #{tpu_custom_call.1} parent=1 // pred_check
      %p63 = pneg %p62
    $region35: #{tpu_custom_call.1} parent=1 // pred_check_branch
      %65 = sbr.rel (%p63) target = $region37
    $region36: #{tpu_custom_call.1} parent=1 // pred_region
      %vm66 = vcmask 254976
      %67 = vst.msk [vmem:[#allocation2] sm:$0x3] %vm66, 0.0
    $region37: #{tpu_custom_call.1} parent=1 // pred_fallthru
      _
    %v68 = vld [vmem:[#allocation3] sm:$0xff]
    %v69 = vld [vmem:[#allocation3 + $0x8] sm:$0xff]
    %v70 = vld [vmem:[#allocation3 + $0x10] sm:$0xff]
    %v71 = vld [vmem:[#allocation3 + $0x18] sm:$0xff]
    %v72 = vld [vmem:[#allocation3 + $0x20] sm:$0xff]
    %v73 = vld [vmem:[#allocation3 + $0x28] sm:$0xff]
    %v74 = vld [vmem:[#allocation3 + $0x30] sm:$0xff]
    %v75 = vld [vmem:[#allocation3 + $0x38] sm:$0xff]
    %v76 = vld [vmem:[#allocation3 + $0x40] sm:$0xff]
    %v77 = vld [vmem:[#allocation3 + $0x48] sm:$0xff]
    %v78 = vld [vmem:[#allocation3 + $0x50] sm:$0xff]
    %v79 = vld [vmem:[#allocation3 + $0x58] sm:$0xff]
    %v80 = vld [vmem:[#allocation3 + $0x60] sm:$0xff]
    %v81 = vld [vmem:[#allocation3 + $0x68] sm:$0xff]
    %v82 = vld [vmem:[#allocation3 + $0x70] sm:$0xff]
    %v83 = vld [vmem:[#allocation3 + $0x78] sm:$0xff]
    %v84 = vld [vmem:[#allocation2] sm:$0x3]
    %v85 = vadd.f32 %v68, %v69
    %86 = vadd.xlane.f32.xlu0 %v85
    %v87 = vpop.xlane.xlu0 %86
    %v88 = vadd.f32 %v70, %v71
    %89 = vadd.xlane.f32.xlu0 %v88
    %v90 = vpop.xlane.xlu0 %89
    %v91 = vadd.f32 %v72, %v73
    %92 = vadd.xlane.f32.xlu0 %v91
    %v93 = vpop.xlane.xlu0 %92
    %v94 = vadd.f32 %v74, %v75
    %95 = vadd.xlane.f32.xlu0 %v94
    %v96 = vpop.xlane.xlu0 %95
    %v97 = vadd.f32 %v76, %v77
    %98 = vadd.xlane.f32.xlu0 %v97
    %v99 = vpop.xlane.xlu0 %98
    %v100 = vadd.f32 %v78, %v79
    %101 = vadd.xlane.f32.xlu0 %v100
    %v102 = vpop.xlane.xlu0 %101
    %v103 = vadd.f32 %v80, %v81
    %104 = vadd.xlane.f32.xlu0 %v103
    %v105 = vpop.xlane.xlu0 %104
    %v106 = vadd.f32 %v82, %v83
    %107 = vadd.xlane.f32.xlu0 %v106
    %v108 = vpop.xlane.xlu0 %107
    %v117 = vlaneseq
    %v118 = vand.u32 %v117, 127
    %v119 = vlaneseq
    %v120 = vshrl.u32 %v119, 7
    %v121 = vsub.s32 %v118, %v120
    %v122 = vrot.slane %v87, %v121
    %v123 = vadd.s32 %v118, 4294967288
    %v124 = vlaneseq
    %v125 = vshrl.u32 %v124, 7
    %v126 = vsub.s32 %v123, %v125
    %v127 = vrot.slane %v90, %v126
    %vm128 = vcmask 130112
    %v129 = vsel %vm128, %v127, %v122
    %v130 = vadd.s32 %v118, 4294967280
    %v131 = vlaneseq
    %v132 = vshrl.u32 %v131, 7
    %v133 = vsub.s32 %v130, %v132
    %v134 = vrot.slane %v93, %v133
    %vm135 = vcmask 195712
    %v136 = vsel %vm135, %v134, %v129
    %v137 = vadd.s32 %v118, 4294967272
    %v138 = vlaneseq
    %v139 = vshrl.u32 %v138, 7
    %v140 = vsub.s32 %v137, %v139
    %v141 = vrot.slane %v96, %v140
    %vm142 = vcmask 261312
    %v143 = vsel %vm142, %v141, %v136
    %v144 = vlaneseq
    %v145 = vshrl.u32 %v144, 7
    %v146 = vsub.s32 %v118, %v145
    %v147 = vrot.slane %v99, %v146
    %v148 = vlaneseq
    %v149 = vshrl.u32 %v148, 7
    %v150 = vsub.s32 %v123, %v149
    %v151 = vrot.slane %v102, %v150
    %v152 = vsel %vm128, %v151, %v147
    %v153 = vlaneseq
    %v154 = vshrl.u32 %v153, 7
    %v155 = vsub.s32 %v130, %v154
    %v156 = vrot.slane %v105, %v155
    %v157 = vsel %vm135, %v156, %v152
    %v158 = vlaneseq
    %v159 = vshrl.u32 %v158, 7
    %v160 = vsub.s32 %v137, %v159
    %v161 = vrot.slane %v108, %v160
    %v162 = vsel %vm142, %v161, %v157
    %vm163 = vcmask 1041409
    %v164 = vsel %vm163, %v162, %v143
    %v166 = vadd.f32 %v84, %v164
    %vm167 = vcmask 254976
    %168 = vst.msk [vmem:[#allocation2] sm:$0x3] %vm167, %v166
    // Predicated region
    $region38: #{tpu_custom_call.1} parent=1 // pred_check
      %p169 = pneg %p62
    $region39: #{tpu_custom_call.1} parent=1 // pred_check_branch
      %171 = sbr.rel (%p169) target = $region41
    $region40: #{tpu_custom_call.1} parent=1 // pred_region
      %v172 = vld [vmem:[#allocation2] sm:$0x3]
      %v173 = vmul.f32 %v172, 0.00390625
      %v174 = vld [vmem:[#allocation6] sm:$0xff]
      %v175 = vld [vmem:[#allocation6 + $0x8] sm:$0xff]
      %v176 = vld [vmem:[#allocation6 + $0x10] sm:$0xff]
      %v177 = vld [vmem:[#allocation6 + $0x18] sm:$0xff]
      %v178 = vld [vmem:[%s2] sm:$0x1]
      %v180 = vlaneseq
      %v181 = vshrl.u32 %v180, 7
      %v182 = vsub.s32 0, %v181
      %v183 = vrot.slane %v178, %v182
      %vm185 = vcmask 261120
      %v187 = vsel %vm185, %v173, 0
      %189 = vmatprep.subr.mxu0 0.0
      %190 = vmatpush1.msra.mxu0 %v174
      %191 = vmatprep.subr.mxu0 0.0
      %192 = vmatpush1.msra.mxu0 %v175
      %193 = vmatprep.subr.mxu0 0.0
      %194 = vmatpush1.msra.mxu0 %v176
      %195 = vmatprep.subr.mxu0 0.0
      %196 = vmatpush1.msra.mxu0 %v177
      %197 = vmatprep.subr.mxu0 0.0
      %198 = vmatpush1.msra.mxu0 0.0
      %199 = vmatprep.subr.mxu0 0.0
      %200 = vmatpush1.msra.mxu0 0.0
      %201 = vmatprep.subr.mxu0 0.0
      %202 = vmatpush1.msra.mxu0 0.0
      %203 = vmatprep.subr.mxu0 0.0
      %204 = vmatpush1.msra.mxu0 0.0
      %205 = vmatprep.subr.mxu0 0.0
      %206 = vmatpush1.msra.mxu0 0.0
      %207 = vmatprep.subr.mxu0 0.0
      %208 = vmatpush1.msra.mxu0 0.0
      %209 = vmatprep.subr.mxu0 0.0
      %210 = vmatpush1.msra.mxu0 0.0
      %211 = vmatprep.subr.mxu0 0.0
      %212 = vmatpush1.msra.mxu0 0.0
      %213 = vmatprep.subr.mxu0 0.0
      %214 = vmatpush1.msra.mxu0 0.0
      %215 = vmatprep.subr.mxu0 0.0
      %216 = vmatpush1.msra.mxu0 0.0
      %217 = vmatprep.subr.mxu0 0.0
      %218 = vmatpush1.msra.mxu0 0.0
      %219 = vmatprep.subr.mxu0 0.0
      %220 = vmatpush1.msra.mxu0 0.0
      %221 = vmatprep.subr.mxu0 0.0
      %222 = vmatpush1.msra.mxu0 0.0
      %223 = vmatprep.subr.mxu0 0.0
      %224 = vmatpush1.msra.mxu0 0.0
      %225 = vmatprep.subr.mxu0 0.0
      %226 = vmatpush1.msra.mxu0 0.0
      %227 = vmatprep.subr.mxu0 0.0
      %228 = vmatpush1.msra.mxu0 0.0
      %229 = vmatprep.subr.mxu0 0.0
      %230 = vmatpush1.msra.mxu0 0.0
      %231 = vmatprep.subr.mxu0 0.0
      %232 = vmatpush1.msra.mxu0 0.0
      %233 = vmatprep.subr.mxu0 0.0
      %234 = vmatpush1.msra.mxu0 0.0
      %235 = vmatprep.subr.mxu0 0.0
      %236 = vmatpush1.msra.mxu0 0.0
      %237 = vmatprep.subr.mxu0 0.0
      %238 = vmatpush1.msra.mxu0 0.0
      %239 = vmatprep.subr.mxu0 0.0
      %240 = vmatpush1.msra.mxu0 0.0
      %241 = vmatprep.subr.mxu0 0.0
      %242 = vmatpush1.msra.mxu0 0.0
      %243 = vmatprep.subr.mxu0 0.0
      %244 = vmatpush1.msra.mxu0 0.0
      %245 = vmatprep.subr.mxu0 0.0
      %246 = vmatpush1.msra.mxu0 0.0
      %247 = vmatprep.subr.mxu0 0.0
      %248 = vmatpush1.msra.mxu0 0.0
      %249 = vmatprep.subr.mxu0 0.0
      %250 = vmatpush1.msra.mxu0 0.0
      %251 = vmatprep.subr.mxu0 0.0
      %252 = vmatpush1.msra.mxu0 0.0
      %253 = vmatprep.mubr.f32.mxu0 0.0
      %254 = vmatmul.mubr.f32.gmra.mrb[0].mxu0 %v187
      %v255 = vpop.f32.mrb[0].mxu0
      %v256 = vadd.f32 %v183, %v255
      %v257 = vpop.f32.mrb[0].mxu0
      %258 = vdwg.mxu0
      %v259 = vsub.f32 0.0, %v256
      %v260 = vmul.f32 %v259, 1.442695
      %v261 = vpow.pop %v260
      %v262 = vadd.f32 %v261, 1.0
      %v263 = vrcp.pop %v262
      %v264 = vmul.f32 1.0, %v263
      %v265 = vmul.f32 %v256, %v264
      %v266 = vld [vmem:[#allocation8] sm:$0xff]
      %v267 = vld [vmem:[#allocation8 + $0x8] sm:$0xff]
      %v268 = vld [vmem:[#allocation8 + $0x10] sm:$0xff]
      %v269 = vld [vmem:[#allocation8 + $0x18] sm:$0xff]
      %v270 = vld [vmem:[%s4] sm:$0x1]
      %v272 = vlaneseq
      %v273 = vshrl.u32 %v272, 7
      %v274 = vsub.s32 0, %v273
      %v275 = vrot.slane %v270, %v274
      %v278 = vsel %vm185, %v265, 0
      %280 = vmatprep.subr.mxu0 0.0
      %281 = vmatpush1.msra.mxu0 %v266
      %282 = vmatprep.subr.mxu0 0.0
      %283 = vmatpush1.msra.mxu0 %v267
      %284 = vmatprep.subr.mxu0 0.0
      %285 = vmatpush1.msra.mxu0 %v268
      %286 = vmatprep.subr.mxu0 0.0
      %287 = vmatpush1.msra.mxu0 %v269
      %288 = vmatprep.subr.mxu0 0.0
      %289 = vmatpush1.msra.mxu0 0.0
      %290 = vmatprep.subr.mxu0 0.0
      %291 = vmatpush1.msra.mxu0 0.0
      %292 = vmatprep.subr.mxu0 0.0
      %293 = vmatpush1.msra.mxu0 0.0
      %294 = vmatprep.subr.mxu0 0.0
      %295 = vmatpush1.msra.mxu0 0.0
      %296 = vmatprep.subr.mxu0 0.0
      %297 = vmatpush1.msra.mxu0 0.0
      %298 = vmatprep.subr.mxu0 0.0
      %299 = vmatpush1.msra.mxu0 0.0
      %300 = vmatprep.subr.mxu0 0.0
      %301 = vmatpush1.msra.mxu0 0.0
      %302 = vmatprep.subr.mxu0 0.0
      %303 = vmatpush1.msra.mxu0 0.0
      %304 = vmatprep.subr.mxu0 0.0
      %305 = vmatpush1.msra.mxu0 0.0
      %306 = vmatprep.subr.mxu0 0.0
      %307 = vmatpush1.msra.mxu0 0.0
      %308 = vmatprep.subr.mxu0 0.0
      %309 = vmatpush1.msra.mxu0 0.0
      %310 = vmatprep.subr.mxu0 0.0
      %311 = vmatpush1.msra.mxu0 0.0
      %312 = vmatprep.subr.mxu0 0.0
      %313 = vmatpush1.msra.mxu0 0.0
      %314 = vmatprep.subr.mxu0 0.0
      %315 = vmatpush1.msra.mxu0 0.0
      %316 = vmatprep.subr.mxu0 0.0
      %317 = vmatpush1.msra.mxu0 0.0
      %318 = vmatprep.subr.mxu0 0.0
      %319 = vmatpush1.msra.mxu0 0.0
      %320 = vmatprep.subr.mxu0 0.0
      %321 = vmatpush1.msra.mxu0 0.0
      %322 = vmatprep.subr.mxu0 0.0
      %323 = vmatpush1.msra.mxu0 0.0
      %324 = vmatprep.subr.mxu0 0.0
      %325 = vmatpush1.msra.mxu0 0.0
      %326 = vmatprep.subr.mxu0 0.0
      %327 = vmatpush1.msra.mxu0 0.0
      %328 = vmatprep.subr.mxu0 0.0
      %329 = vmatpush1.msra.mxu0 0.0
      %330 = vmatprep.subr.mxu0 0.0
      %331 = vmatpush1.msra.mxu0 0.0
      %332 = vmatprep.subr.mxu0 0.0
      %333 = vmatpush1.msra.mxu0 0.0
      %334 = vmatprep.subr.mxu0 0.0
      %335 = vmatpush1.msra.mxu0 0.0
      %336 = vmatprep.subr.mxu0 0.0
      %337 = vmatpush1.msra.mxu0 0.0
      %338 = vmatprep.subr.mxu0 0.0
      %339 = vmatpush1.msra.mxu0 0.0
      %340 = vmatprep.subr.mxu0 0.0
      %341 = vmatpush1.msra.mxu0 0.0
      %342 = vmatprep.subr.mxu0 0.0
      %343 = vmatpush1.msra.mxu0 0.0
      %344 = vmatprep.mubr.f32.mxu0 0.0
      %345 = vmatmul.mubr.f32.gmra.mrb[0].mxu0 %v278
      %v346 = vpop.f32.mrb[0].mxu0
      %v347 = vadd.f32 %v275, %v346
      %v348 = vpop.f32.mrb[0].mxu0
      %349 = vdwg.mxu0
      %v350 = vsub.f32 0.0, %v347
      %v351 = vmul.f32 %v350, 1.442695
      %v352 = vpow.pop %v351
      %v353 = vadd.f32 %v352, 1.0
      %v354 = vrcp.pop %v353
      %v355 = vmul.f32 1.0, %v354
      %v356 = vmul.f32 %v347, %v355
      %357 = vst.msk [vmem:[#allocation9] sm:$0x3] %vm167, %v356
    $region41: #{tpu_custom_call.1} parent=1 // pred_fallthru
      _
    // Predicated region
    $region42: #{tpu_custom_call.1} parent=1 // pred_check
      _
    $region43: #{tpu_custom_call.1} parent=1 // pred_check_branch
      %359 = sbr.rel (0) target = $region45
    $region44: #{tpu_custom_call.1} parent=1 // pred_region
      %s361 = ssub.s32 32, 32
      %362 = vsyncadd [#allocation5], %s361
      %s364 = sshll.u32 [#allocation9], 4
      %s365 = int_to_ptr.vmem [resolvable:$true] %s364
      %367 = dma.vmem_to_hbm [thread:$0]  %s365, 32, %s5, [#allocation5]
    $region45: #{tpu_custom_call.1} parent=1 // pred_fallthru
      _
    // Predicated region
    $region46: #{tpu_custom_call.1} parent=1 // pred_check
      _
    $region47: #{tpu_custom_call.1} parent=1 // pred_check_branch
      %369 = sbr.rel (0) target = $region49
    $region48: #{tpu_custom_call.1} parent=1 // pred_region
      %370 = dma.done [#allocation5], 32
    $region49: #{tpu_custom_call.1} parent=1 // pred_fallthru
      _
    %371 = vsyncpa [#allocation4], 1
    %372 = vsyncpa [#allocation7], 1
    %373 = vsyncpa [#allocation5], 1

</llo_original>
